<compile_context>
chip_gen: v5e
topology: v5e:2x2
jax: 0.10.0
libtpu: 0.0.40
codegen_flags: <defaults>
</compile_context>

<pallas_src>
import jax
import jax.numpy as jnp
from jax.experimental import pallas as pl
from jax.experimental.pallas import tpu as pltpu


def _round_up(x, m):
    return (x + m - 1) // m * m


# ----------------------------------------------------------------------------
# Pallas kernel: one grid step processes a (D, tb) row tile through the 3-layer
# Bayes FFN (mean weights, sample=False path) and produces both the per-depth
# outputs and the categorical-weighted sum over depths.
# ----------------------------------------------------------------------------
def _dun_ffn_kernel(cat_ref,               # SMEM (D,)      f32  softmax(log_cat)
                    x_ref,                 # VMEM (D, tb, H) bf16
                    w_in_ref, b_in_ref,    # VMEM (H, F) bf16, (1, F) f32
                    w_h_ref, b_h_ref,      # VMEM (F, F) bf16, (1, F) f32
                    w_out_ref, b_out_ref,  # VMEM (F, Tp) bf16, (1, Tp) f32
                    out_list_ref,          # VMEM (D, tb, Tp) bf16
                    out_ref):              # VMEM (tb, Tp)    f32
    D = x_ref.shape[0]

    # Hoist the (grid-resident) weight/bias loads out of the depth loop.
    w_in = w_in_ref[...]
    b_in = b_in_ref[...]
    w_h = w_h_ref[...]
    b_h = b_h_ref[...]
    w_out = w_out_ref[...]
    b_out = b_out_ref[...]

    acc = None
    for d in range(D):                      # D is a small compile-time constant
        # layer_in -> act -> layer_hid_1 -> act -> layer_out  (ffn_num_layers=3)
        h = jnp.dot(x_ref[d], w_in, preferred_element_type=jnp.float32)
        h = jnp.maximum(h + b_in, 0.0)                       # f32 ReLU (v5e-safe)

        h = jnp.dot(h.astype(w_h.dtype), w_h, preferred_element_type=jnp.float32)
        h = jnp.maximum(h + b_h, 0.0)

        o = jnp.dot(h.astype(w_out.dtype), w_out, preferred_element_type=jnp.float32)
        o = o + b_out                                        # (tb, Tp) f32

        out_list_ref[d] = o.astype(out_list_ref.dtype)       # lane-dense bf16 store

        # output = sum_d cat[d] * output_list[d]
        scaled = cat_ref[d] * o                              # SMEM scalar * f32 tile
        acc = scaled if d == 0 else acc + scaled

    out_ref[...] = acc.astype(out_ref.dtype)                 # lane-dense f32 store


def _run_dun_ffn(x_list, cat, w_in, b_in, w_h, b_h, w_out_p, b_out_p,
                 num_tasks, row_tile=None):
    """x_list: (D, B, H) f32/bf16; weights already padded/cast by prepare_ffn_params."""
    D, B, H = x_list.shape
    F = w_in.shape[1]
    Tp = w_out_p.shape[1]
    T = num_tasks

    # Row tile: multiple of 16 (bf16 sublane packing); as large as reasonable.
    if row_tile is None:
        row_tile = min(256, _round_up(B, 16))
    tb = max(16, _round_up(row_tile, 16))
    B_pad = _round_up(B, tb)

    xb = x_list.astype(jnp.bfloat16)
    if B_pad != B:
        xb = jnp.pad(xb, ((0, 0), (0, B_pad - B), (0, 0)))

    grid = (B_pad // tb,)

    out_shapes = (
        jax.ShapeDtypeStruct((D, B_pad, Tp), jnp.bfloat16),   # output_list (padded)
        jax.ShapeDtypeStruct((B_pad, Tp), jnp.float32),       # output      (padded)
    )

    out_list_p, out_p = pl.pallas_call(
        _dun_ffn_kernel,
        out_shape=out_shapes,
        grid=grid,
        in_specs=[
            pl.BlockSpec(memory_space=pltpu.MemorySpace.SMEM),   # cat (D,)
            pl.BlockSpec((D, tb, H), lambda i: (0, i, 0)),       # x tile
            pl.BlockSpec((H, F), lambda i: (0, 0)),              # w_in  (resident)
            pl.BlockSpec((1, F), lambda i: (0, 0)),              # b_in
            pl.BlockSpec((F, F), lambda i: (0, 0)),              # w_hid
            pl.BlockSpec((1, F), lambda i: (0, 0)),              # b_hid
            pl.BlockSpec((F, Tp), lambda i: (0, 0)),             # w_out (padded)
            pl.BlockSpec((1, Tp), lambda i: (0, 0)),             # b_out (padded)
        ],
        out_specs=(
            pl.BlockSpec((D, tb, Tp), lambda i: (0, i, 0)),
            pl.BlockSpec((tb, Tp), lambda i: (i, 0)),
        ),
        compiler_params=pltpu.CompilerParams(
            dimension_semantics=("parallel",),                   # megacore on v7x
        ),
    )(cat, xb, w_in, b_in, w_h, b_h, w_out_p, b_out_p)

    output_list = out_list_p[:, :B, :T].astype(jnp.float32)
    output = out_p[:B, :T]
    return output_list, output


# ----------------------------------------------------------------------------
# One-time parameter preparation (hoisted off the per-forward critical path).
# ----------------------------------------------------------------------------
def prepare_ffn_params(params):
    T = params["w_out"].shape[1]
    Tp = _round_up(T, 128)
    pad = ((0, 0), (0, Tp - T))
    return {
        "w_in":  params["w_in"].astype(jnp.bfloat16),
        "b_in":  params["b_in"].astype(jnp.float32),
        "w_hid": params["w_hid"].astype(jnp.bfloat16),
        "b_hid": params["b_hid"].astype(jnp.float32),
        "w_out": jnp.pad(params["w_out"], pad).astype(jnp.bfloat16),
        "b_out": jnp.pad(params["b_out"], pad).astype(jnp.float32),
        "num_tasks": T,
    }


# ----------------------------------------------------------------------------
# Parameter-only glue: BayesLinear KL (mean/rho vs. isotropic Gaussian prior).
# ----------------------------------------------------------------------------
def _bayes_linear_kl(w_mu, w_rho, b_mu, b_rho, prior_sig):
    def _kl(mu, sig):
        return jnp.sum(jnp.log(prior_sig / sig)
                       + (sig ** 2 + mu ** 2) / (2.0 * prior_sig ** 2) - 0.5)
    w_sig = jax.nn.softplus(w_rho)
    b_sig = jax.nn.softplus(b_rho)
    return _kl(w_mu, w_sig) + _kl(b_mu, b_sig)


def molecule_model_dun_forward(x_list, params, ffn_prep, tkl_encoder, row_tile=None):
    """Forward pass matching MoleculeModelDUN.forward (sample=False path)."""
    D = x_list.shape[0]

    # cat = softmax(log_cat), via log_softmax for a stable dkl later.
    log_cat = params["log_cat"].astype(jnp.float32)
    logp = jax.nn.log_softmax(log_cat)
    cat = jnp.exp(logp)

    output_list, output = _run_dun_ffn(
        x_list, cat,
        ffn_prep["w_in"], ffn_prep["b_in"],
        ffn_prep["w_hid"], ffn_prep["b_hid"],
        ffn_prep["w_out"], ffn_prep["b_out"],
        ffn_prep["num_tasks"], row_tile=row_tile)

    # tkl: in the torch loop `tkl = tkl_encoder` is RESET each depth iteration,
    # so the returned tkl == tkl_encoder + one pass of the (shared) layer KLs.
    prior_sig = params["prior_sig"]
    tkl = (tkl_encoder
           + _bayes_linear_kl(params["w_in"], params["w_in_rho"],
                              params["b_in"][0], params["b_in_rho"], prior_sig)
           + _bayes_linear_kl(params["w_hid"], params["w_hid_rho"],
                              params["b_hid"][0], params["b_hid_rho"], prior_sig)
           + _bayes_linear_kl(params["w_out"], params["w_out_rho"],
                              params["b_out"][0], params["b_out_rho"], prior_sig))

    # dkl = sum(cat * log(cat * D)), computed from log-softmax (no log(0)).
    dkl = jnp.sum(cat * (logp + jnp.log(jnp.float32(D))))
    return output, output_list, tkl, dkl


# ----------------------------------------------------------------------------
# Deterministic synthetic setup.
# ----------------------------------------------------------------------------
def make_params(key, hidden, ffn_hidden, num_tasks, depth_range, prior_sig):
    ks = jax.random.split(key, 12)
    s = 0.05
    return {
        "w_in":      s * jax.random.normal(ks[0], (hidden, ffn_hidden), jnp.float32),
        "w_in_rho": -3.0 + 0.1 * jax.random.normal(ks[1], (hidden, ffn_hidden), jnp.float32),
        "b_in":      s * jax.random.normal(ks[2], (1, ffn_hidden), jnp.float32),
        "b_in_rho": -3.0 * jnp.ones((ffn_hidden,), jnp.float32),
        "w_hid":     s * jax.random.normal(ks[3], (ffn_hidden, ffn_hidden), jnp.float32),
        "w_hid_rho": -3.0 + 0.1 * jax.random.normal(ks[4], (ffn_hidden, ffn_hidden), jnp.float32),
        "b_hid":     s * jax.random.normal(ks[5], (1, ffn_hidden), jnp.float32),
        "b_hid_rho": -3.0 * jnp.ones((ffn_hidden,), jnp.float32),
        "w_out":     s * jax.random.normal(ks[6], (ffn_hidden, num_tasks), jnp.float32),
        "w_out_rho": -3.0 + 0.1 * jax.random.normal(ks[7], (ffn_hidden, num_tasks), jnp.float32),
        "b_out":     s * jax.random.normal(ks[8], (1, num_tasks), jnp.float32),
        "b_out_rho": -3.0 * jnp.ones((num_tasks,), jnp.float32),
        "log_cat":   0.1 * jax.random.normal(ks[9], (depth_range,), jnp.float32),
        "log_noise": jnp.ones((num_tasks,), jnp.float32),   # created in __init__; unused in forward
        "prior_sig": jnp.float32(prior_sig),
    }


if __name__ == "__main__":
    # Small shapes consistent with the module:
    #   depth_range D=3 (one encoder output per depth), batch B=32,
    #   hidden_size H=32, ffn_hidden_size F=32, num_tasks T=4, ffn_num_layers=3.
    # row_tile=16 -> grid of 2 steps to exercise the batch-tiled pipeline.
    D, B, H, F, T = 3, 32, 32, 32, 4
    prior_sig = 0.05

    key = jax.random.PRNGKey(0)
    k_x, k_p = jax.random.split(key)

    # Stand-in for MPNDUN encoder outputs (one hidden representation per depth)
    x_list = jax.random.normal(k_x, (D, B, H), jnp.float32)
    tkl_encoder = jnp.float32(0.0)

    params = make_params(k_p, H, F, T, D, prior_sig)
    ffn_prep = prepare_ffn_params(params)      # one-time pad + bf16 cast

    output, output_list, tkl, dkl = molecule_model_dun_forward(
        x_list, params, ffn_prep, tkl_encoder, row_tile=16)
    jax.block_until_ready((output, output_list, tkl, dkl))

    # Pure-JAX reference of the kernel path (reproduces the bf16 operand
    # quantization, accumulates in f32 with HIGHEST precision).
    def _ref():
        xq = x_list.astype(jnp.bfloat16).astype(jnp.float32)
        w_in = params["w_in"].astype(jnp.bfloat16).astype(jnp.float32)
        w_h = params["w_hid"].astype(jnp.bfloat16).astype(jnp.float32)
        w_o = params["w_out"].astype(jnp.bfloat16).astype(jnp.float32)
        hp = jax.lax.Precision.HIGHEST
        outs = []
        for d in range(D):
            h = jnp.maximum(jnp.dot(xq[d], w_in, precision=hp) + params["b_in"], 0.0)
            h = h.astype(jnp.bfloat16).astype(jnp.float32)
            h = jnp.maximum(jnp.dot(h, w_h, precision=hp) + params["b_hid"], 0.0)
            h = h.astype(jnp.bfloat16).astype(jnp.float32)
            outs.append(jnp.dot(h, w_o, precision=hp) + params["b_out"])
        outs = jnp.stack(outs)
        cat = jax.nn.softmax(params["log_cat"])
        return jnp.sum(cat.reshape(D, 1, 1) * outs, 0), outs

    ref_out, ref_list = _ref()
    assert jnp.allclose(output, ref_out, atol=1e-3, rtol=1e-2), "output mismatch"
    assert jnp.allclose(output_list, ref_list, atol=3e-3, rtol=3e-2), "output_list mismatch"
    assert bool(jnp.isfinite(tkl)) and bool(jnp.isfinite(dkl))

    print("KERNEL_OK")
</pallas_src>

<mosaic_0001>
module attributes {stable_mosaic.version = 11 : i64} {
  func.func @_dun_ffn_kernel(%arg0: i32, %arg1: memref<3xf32, #tpu.memory_space<smem>>, %arg2: memref<3x16x32xbf16, #tpu.memory_space<vmem>>, %arg3: memref<32x32xbf16, #tpu.memory_space<vmem>>, %arg4: memref<1x32xf32, #tpu.memory_space<vmem>>, %arg5: memref<32x32xbf16, #tpu.memory_space<vmem>>, %arg6: memref<1x32xf32, #tpu.memory_space<vmem>>, %arg7: memref<32x128xbf16, #tpu.memory_space<vmem>>, %arg8: memref<1x128xf32, #tpu.memory_space<vmem>>, %arg9: memref<3x16x128xbf16, #tpu.memory_space<vmem>>, %arg10: memref<16x128xf32, #tpu.memory_space<vmem>>) attributes {dimension_semantics = [#tpu.dimension_semantics<parallel>], iteration_bounds = array<i64: 2>, scalar_prefetch = 0 : i64, scratch_operands = 0 : i64, tpu.core_type = #tpu.core_type<tc>, window_params = [{transform_indices = @transform_0, window_bounds = array<i64: 3>}, {transform_indices = @transform_1, window_bounds = array<i64: 3, 16, 32>}, {pipeline_mode = #tpu.pipeline_mode<synchronous>, transform_indices = @transform_2, window_bounds = array<i64: 32, 32>}, {pipeline_mode = #tpu.pipeline_mode<synchronous>, transform_indices = @transform_3, window_bounds = array<i64: 1, 32>}, {pipeline_mode = #tpu.pipeline_mode<synchronous>, transform_indices = @transform_4, window_bounds = array<i64: 32, 32>}, {pipeline_mode = #tpu.pipeline_mode<synchronous>, transform_indices = @transform_5, window_bounds = array<i64: 1, 32>}, {pipeline_mode = #tpu.pipeline_mode<synchronous>, transform_indices = @transform_6, window_bounds = array<i64: 32, 128>}, {pipeline_mode = #tpu.pipeline_mode<synchronous>, transform_indices = @transform_7, window_bounds = array<i64: 1, 128>}, {transform_indices = @transform_8, window_bounds = array<i64: 3, 16, 128>}, {transform_indices = @transform_9, window_bounds = array<i64: 16, 128>}]} {
    %c0 = arith.constant 0 : index
    %c0_0 = arith.constant 0 : index
    %0 = vector.load %arg3[%c0, %c0_0] : memref<32x32xbf16, #tpu.memory_space<vmem>>, vector<32x32xbf16>
    %c0_1 = arith.constant 0 : index
    %c0_2 = arith.constant 0 : index
    %1 = vector.load %arg4[%c0_1, %c0_2] : memref<1x32xf32, #tpu.memory_space<vmem>>, vector<1x32xf32>
    %c0_3 = arith.constant 0 : index
    %c0_4 = arith.constant 0 : index
    %2 = vector.load %arg5[%c0_3, %c0_4] : memref<32x32xbf16, #tpu.memory_space<vmem>>, vector<32x32xbf16>
    %c0_5 = arith.constant 0 : index
    %c0_6 = arith.constant 0 : index
    %3 = vector.load %arg6[%c0_5, %c0_6] : memref<1x32xf32, #tpu.memory_space<vmem>>, vector<1x32xf32>
    %c0_7 = arith.constant 0 : index
    %c0_8 = arith.constant 0 : index
    %4 = vector.load %arg7[%c0_7, %c0_8] : memref<32x128xbf16, #tpu.memory_space<vmem>>, vector<32x128xbf16>
    %c0_9 = arith.constant 0 : index
    %c0_10 = arith.constant 0 : index
    %5 = vector.load %arg8[%c0_9, %c0_10] : memref<1x128xf32, #tpu.memory_space<vmem>>, vector<1x128xf32>
    %c0_11 = arith.constant 0 : index
    %c0_12 = arith.constant 0 : index
    %c0_13 = arith.constant 0 : index
    %6 = vector.load %arg2[%c0_11, %c0_12, %c0_13] : memref<3x16x32xbf16, #tpu.memory_space<vmem>>, vector<1x16x32xbf16>
    %7 = vector.shape_cast %6 : vector<1x16x32xbf16> to vector<16x32xbf16>
    %cst = arith.constant dense<0.000000e+00> : vector<16x32xf32>
    %8 = tpu.matmul %7, %0, %cst {dimension_numbers = #tpu.dot_dimension_numbers<[1], [0], [0], [1], [0, 0, 1, 1], [], []>} : vector<16x32xbf16>, vector<32x32xbf16>, vector<16x32xf32> -> vector<16x32xf32>
    %9 = vector.broadcast %1 : vector<1x32xf32> to vector<16x32xf32>
    %10 = arith.addf %8, %9 : vector<16x32xf32>
    %cst_14 = arith.constant 0.000000e+00 : f32
    %11 = vector.broadcast %cst_14 : f32 to vector<16x32xf32>
    %12 = arith.maximumf %10, %11 : vector<16x32xf32>
    %13 = arith.truncf %12 : vector<16x32xf32> to vector<16x32xbf16>
    %cst_15 = arith.constant dense<0.000000e+00> : vector<16x32xf32>
    %14 = tpu.matmul %13, %2, %cst_15 {dimension_numbers = #tpu.dot_dimension_numbers<[1], [0], [0], [1], [0, 0, 1, 1], [], []>} : vector<16x32xbf16>, vector<32x32xbf16>, vector<16x32xf32> -> vector<16x32xf32>
    %15 = vector.broadcast %3 : vector<1x32xf32> to vector<16x32xf32>
    %16 = arith.addf %14, %15 : vector<16x32xf32>
    %cst_16 = arith.constant 0.000000e+00 : f32
    %17 = vector.broadcast %cst_16 : f32 to vector<16x32xf32>
    %18 = arith.maximumf %16, %17 : vector<16x32xf32>
    %19 = arith.truncf %18 : vector<16x32xf32> to vector<16x32xbf16>
    %cst_17 = arith.constant dense<0.000000e+00> : vector<16x128xf32>
    %20 = tpu.matmul %19, %4, %cst_17 {dimension_numbers = #tpu.dot_dimension_numbers<[1], [0], [0], [1], [0, 0, 1, 1], [], []>} : vector<16x32xbf16>, vector<32x128xbf16>, vector<16x128xf32> -> vector<16x128xf32>
    %21 = vector.broadcast %5 : vector<1x128xf32> to vector<16x128xf32>
    %22 = arith.addf %20, %21 : vector<16x128xf32>
    %23 = arith.truncf %22 : vector<16x128xf32> to vector<16x128xbf16>
    %c0_18 = arith.constant 0 : index
    %c0_19 = arith.constant 0 : index
    %c0_20 = arith.constant 0 : index
    %24 = vector.load %arg9[%c0_18, %c0_19, %c0_20] : memref<3x16x128xbf16, #tpu.memory_space<vmem>>, vector<1x16x128xbf16>
    %25 = vector.shape_cast %24 : vector<1x16x128xbf16> to vector<16x128xbf16>
    %26 = vector.shape_cast %23 : vector<16x128xbf16> to vector<1x16x128xbf16>
    tpu.vector_store %arg9[%c0_18, %c0_19, %c0_20], %26 {strides = array<i32>} : memref<3x16x128xbf16, #tpu.memory_space<vmem>>, vector<1x16x128xbf16>,
    %c0_21 = arith.constant 0 : index
    %27 = memref.load %arg1[%c0_21] : memref<3xf32, #tpu.memory_space<smem>>
    %28 = vector.broadcast %27 : f32 to vector<16x128xf32>
    %29 = arith.mulf %28, %22 : vector<16x128xf32>
    %c1 = arith.constant 1 : index
    %c0_22 = arith.constant 0 : index
    %c0_23 = arith.constant 0 : index
    %30 = vector.load %arg2[%c1, %c0_22, %c0_23] : memref<3x16x32xbf16, #tpu.memory_space<vmem>>, vector<1x16x32xbf16>
    %31 = vector.shape_cast %30 : vector<1x16x32xbf16> to vector<16x32xbf16>
    %cst_24 = arith.constant dense<0.000000e+00> : vector<16x32xf32>
    %32 = tpu.matmul %31, %0, %cst_24 {dimension_numbers = #tpu.dot_dimension_numbers<[1], [0], [0], [1], [0, 0, 1, 1], [], []>} : vector<16x32xbf16>, vector<32x32xbf16>, vector<16x32xf32> -> vector<16x32xf32>
    %33 = vector.broadcast %1 : vector<1x32xf32> to vector<16x32xf32>
    %34 = arith.addf %32, %33 : vector<16x32xf32>
    %cst_25 = arith.constant 0.000000e+00 : f32
    %35 = vector.broadcast %cst_25 : f32 to vector<16x32xf32>
    %36 = arith.maximumf %34, %35 : vector<16x32xf32>
    %37 = arith.truncf %36 : vector<16x32xf32> to vector<16x32xbf16>
    %cst_26 = arith.constant dense<0.000000e+00> : vector<16x32xf32>
    %38 = tpu.matmul %37, %2, %cst_26 {dimension_numbers = #tpu.dot_dimension_numbers<[1], [0], [0], [1], [0, 0, 1, 1], [], []>} : vector<16x32xbf16>, vector<32x32xbf16>, vector<16x32xf32> -> vector<16x32xf32>
    %39 = vector.broadcast %3 : vector<1x32xf32> to vector<16x32xf32>
    %40 = arith.addf %38, %39 : vector<16x32xf32>
    %cst_27 = arith.constant 0.000000e+00 : f32
    %41 = vector.broadcast %cst_27 : f32 to vector<16x32xf32>
    %42 = arith.maximumf %40, %41 : vector<16x32xf32>
    %43 = arith.truncf %42 : vector<16x32xf32> to vector<16x32xbf16>
    %cst_28 = arith.constant dense<0.000000e+00> : vector<16x128xf32>
    %44 = tpu.matmul %43, %4, %cst_28 {dimension_numbers = #tpu.dot_dimension_numbers<[1], [0], [0], [1], [0, 0, 1, 1], [], []>} : vector<16x32xbf16>, vector<32x128xbf16>, vector<16x128xf32> -> vector<16x128xf32>
    %45 = vector.broadcast %5 : vector<1x128xf32> to vector<16x128xf32>
    %46 = arith.addf %44, %45 : vector<16x128xf32>
    %47 = arith.truncf %46 : vector<16x128xf32> to vector<16x128xbf16>
    %c1_29 = arith.constant 1 : index
    %c0_30 = arith.constant 0 : index
    %c0_31 = arith.constant 0 : index
    %48 = vector.load %arg9[%c1_29, %c0_30, %c0_31] : memref<3x16x128xbf16, #tpu.memory_space<vmem>>, vector<1x16x128xbf16>
    %49 = vector.shape_cast %48 : vector<1x16x128xbf16> to vector<16x128xbf16>
    %50 = vector.shape_cast %47 : vector<16x128xbf16> to vector<1x16x128xbf16>
    tpu.vector_store %arg9[%c1_29, %c0_30, %c0_31], %50 {strides = array<i32>} : memref<3x16x128xbf16, #tpu.memory_space<vmem>>, vector<1x16x128xbf16>,
    %c1_32 = arith.constant 1 : index
    %51 = memref.load %arg1[%c1_32] : memref<3xf32, #tpu.memory_space<smem>>
    %52 = vector.broadcast %51 : f32 to vector<16x128xf32>
    %53 = arith.mulf %52, %46 : vector<16x128xf32>
    %54 = arith.addf %29, %53 : vector<16x128xf32>
    %c2 = arith.constant 2 : index
    %c0_33 = arith.constant 0 : index
    %c0_34 = arith.constant 0 : index
    %55 = vector.load %arg2[%c2, %c0_33, %c0_34] : memref<3x16x32xbf16, #tpu.memory_space<vmem>>, vector<1x16x32xbf16>
    %56 = vector.shape_cast %55 : vector<1x16x32xbf16> to vector<16x32xbf16>
    %cst_35 = arith.constant dense<0.000000e+00> : vector<16x32xf32>
    %57 = tpu.matmul %56, %0, %cst_35 {dimension_numbers = #tpu.dot_dimension_numbers<[1], [0], [0], [1], [0, 0, 1, 1], [], []>} : vector<16x32xbf16>, vector<32x32xbf16>, vector<16x32xf32> -> vector<16x32xf32>
    %58 = vector.broadcast %1 : vector<1x32xf32> to vector<16x32xf32>
    %59 = arith.addf %57, %58 : vector<16x32xf32>
    %cst_36 = arith.constant 0.000000e+00 : f32
    %60 = vector.broadcast %cst_36 : f32 to vector<16x32xf32>
    %61 = arith.maximumf %59, %60 : vector<16x32xf32>
    %62 = arith.truncf %61 : vector<16x32xf32> to vector<16x32xbf16>
    %cst_37 = arith.constant dense<0.000000e+00> : vector<16x32xf32>
    %63 = tpu.matmul %62, %2, %cst_37 {dimension_numbers = #tpu.dot_dimension_numbers<[1], [0], [0], [1], [0, 0, 1, 1], [], []>} : vector<16x32xbf16>, vector<32x32xbf16>, vector<16x32xf32> -> vector<16x32xf32>
    %64 = vector.broadcast %3 : vector<1x32xf32> to vector<16x32xf32>
    %65 = arith.addf %63, %64 : vector<16x32xf32>
    %cst_38 = arith.constant 0.000000e+00 : f32
    %66 = vector.broadcast %cst_38 : f32 to vector<16x32xf32>
    %67 = arith.maximumf %65, %66 : vector<16x32xf32>
    %68 = arith.truncf %67 : vector<16x32xf32> to vector<16x32xbf16>
    %cst_39 = arith.constant dense<0.000000e+00> : vector<16x128xf32>
    %69 = tpu.matmul %68, %4, %cst_39 {dimension_numbers = #tpu.dot_dimension_numbers<[1], [0], [0], [1], [0, 0, 1, 1], [], []>} : vector<16x32xbf16>, vector<32x128xbf16>, vector<16x128xf32> -> vector<16x128xf32>
    %70 = vector.broadcast %5 : vector<1x128xf32> to vector<16x128xf32>
    %71 = arith.addf %69, %70 : vector<16x128xf32>
    %72 = arith.truncf %71 : vector<16x128xf32> to vector<16x128xbf16>
    %c2_40 = arith.constant 2 : index
    %c0_41 = arith.constant 0 : index
    %c0_42 = arith.constant 0 : index
    %73 = vector.load %arg9[%c2_40, %c0_41, %c0_42] : memref<3x16x128xbf16, #tpu.memory_space<vmem>>, vector<1x16x128xbf16>
    %74 = vector.shape_cast %73 : vector<1x16x128xbf16> to vector<16x128xbf16>
    %75 = vector.shape_cast %72 : vector<16x128xbf16> to vector<1x16x128xbf16>
    tpu.vector_store %arg9[%c2_40, %c0_41, %c0_42], %75 {strides = array<i32>} : memref<3x16x128xbf16, #tpu.memory_space<vmem>>, vector<1x16x128xbf16>,
    %c2_43 = arith.constant 2 : index
    %76 = memref.load %arg1[%c2_43] : memref<3xf32, #tpu.memory_space<smem>>
    %77 = vector.broadcast %76 : f32 to vector<16x128xf32>
    %78 = arith.mulf %77, %71 : vector<16x128xf32>
    %79 = arith.addf %54, %78 : vector<16x128xf32>
    %c0_44 = arith.constant 0 : index
    %c0_45 = arith.constant 0 : index
    %80 = vector.load %arg10[%c0_44, %c0_45] : memref<16x128xf32, #tpu.memory_space<vmem>>, vector<16x128xf32>
    tpu.vector_store %arg10[%c0_44, %c0_45], %79 {strides = array<i32>} : memref<16x128xf32, #tpu.memory_space<vmem>>, vector<16x128xf32>,
    return
  }
  func.func @transform_0(%arg0: i32) -> i32 {
    %c0_i32 = arith.constant 0 : i32
    %c0_i32_0 = arith.constant 0 : i32
    return %c0_i32 : i32
  }
  func.func @transform_1(%arg0: i32) -> (i32, i32, i32) {
    %c0_i32 = arith.constant 0 : i32
    %c0_i32_0 = arith.constant 0 : i32
    %c0_i32_1 = arith.constant 0 : i32
    return %c0_i32, %arg0, %c0_i32_0 : i32, i32, i32
  }
  func.func @transform_2(%arg0: i32) -> (i32, i32) {
    %c0_i32 = arith.constant 0 : i32
    %c0_i32_0 = arith.constant 0 : i32
    %c0_i32_1 = arith.constant 0 : i32
    return %c0_i32, %c0_i32_0 : i32, i32
  }
  func.func @transform_3(%arg0: i32) -> (i32, i32) {
    %c0_i32 = arith.constant 0 : i32
    %c0_i32_0 = arith.constant 0 : i32
    %c0_i32_1 = arith.constant 0 : i32
    return %c0_i32, %c0_i32_0 : i32, i32
  }
  func.func @transform_4(%arg0: i32) -> (i32, i32) {
    %c0_i32 = arith.constant 0 : i32
    %c0_i32_0 = arith.constant 0 : i32
    %c0_i32_1 = arith.constant 0 : i32
    return %c0_i32, %c0_i32_0 : i32, i32
  }
  func.func @transform_5(%arg0: i32) -> (i32, i32) {
    %c0_i32 = arith.constant 0 : i32
    %c0_i32_0 = arith.constant 0 : i32
    %c0_i32_1 = arith.constant 0 : i32
    return %c0_i32, %c0_i32_0 : i32, i32
  }
  func.func @transform_6(%arg0: i32) -> (i32, i32) {
    %c0_i32 = arith.constant 0 : i32
    %c0_i32_0 = arith.constant 0 : i32
    %c0_i32_1 = arith.constant 0 : i32
    return %c0_i32, %c0_i32_0 : i32, i32
  }
  func.func @transform_7(%arg0: i32) -> (i32, i32) {
    %c0_i32 = arith.constant 0 : i32
    %c0_i32_0 = arith.constant 0 : i32
    %c0_i32_1 = arith.constant 0 : i32
    return %c0_i32, %c0_i32_0 : i32, i32
  }
  func.func @transform_8(%arg0: i32) -> (i32, i32, i32) {
    %c0_i32 = arith.constant 0 : i32
    %c0_i32_0 = arith.constant 0 : i32
    %c0_i32_1 = arith.constant 0 : i32
    return %c0_i32, %arg0, %c0_i32_0 : i32, i32, i32
  }
  func.func @transform_9(%arg0: i32) -> (i32, i32) {
    %c0_i32 = arith.constant 0 : i32
    %c0_i32_0 = arith.constant 0 : i32
    return %arg0, %c0_i32 : i32, i32
  }
}

</mosaic_0001>

<llo_original>
// kernel: tpu_custom_call.1
$region0: #{tpu_custom_call.1}
  #allocation0 [shape = 'u32[]', space=smem, size = 0x4, offset = 0x4, fixed_abs, tag = 'smem constant byte address 0x4 - core index']
  #allocation1 [shape = 'u32[72,128]{1,0:T(1,128)}', space=vmem, size = 0x9000, scoped, tag = 'internal scratch']
  #allocation15 [shape = 's32[]', space=sflag, size = 0x4, offset = 0, fixed_abs, tag = 'sflag constant byte address 0x0 - dummy sync flag']
  #allocation17 [shape = 's32[]', space=sflag, size = 0x4, offset = 0, fixed_abs, tag = 'sflag constant byte address 0x0 - dummy sync flag']
  %s0 = inlined_call_operand.hbm [shape: f32[3], index: 0, kind: input, shape index: {}]
  %s1 = inlined_call_operand.hbm [shape: bf16[3,32,32], index: 1, kind: input, shape index: {}]
  %s2 = inlined_call_operand.hbm [shape: bf16[32,32], index: 2, kind: input, shape index: {}]
  %s3 = inlined_call_operand.vmem [shape: f32[1,32], index: 3, kind: input, shape index: {}]
  %s4 = inlined_call_operand.hbm [shape: bf16[32,32], index: 4, kind: input, shape index: {}]
  %s5 = inlined_call_operand.vmem [shape: f32[1,32], index: 5, kind: input, shape index: {}]
  %s6 = inlined_call_operand.hbm [shape: bf16[32,128], index: 6, kind: input, shape index: {}]
  %s7 = inlined_call_operand.vmem [shape: f32[1,128], index: 7, kind: input, shape index: {}]
  %s8 = inlined_call_operand.hbm [shape: bf16[3,32,128], index: 8, kind: output, shape index: {0}]
  %s9 = inlined_call_operand.hbm [shape: f32[32,128], index: 9, kind: output, shape index: {1}]
  %10 = xla_tuple %s8, %s9
  %s11 = sld [smem:[#allocation0]]
  $region93: #{tpu_custom_call.1} parent=0
    _
  %s13 = ssub.s32 1, %s11
  %s14 = scalar_select 0, %s13, %s11
  $region1: #{tpu_custom_call.1} parent=0
    #allocation2 [shape = 'u8[512]{0}', space=smem, size = 0x200, scoped, tag = 'input window, operand 0, single buffered']
    #allocation3 [shape = 's32[2]{0}', space=sflag, size = 0x8, scoped, tag = 'scoped memory for tpu_custom_call.1']
    #allocation4 [shape = 's32[2]{0}', space=sflag, size = 0x8, scoped, tag = 'scoped memory for tpu_custom_call.1']
    #allocation5 [shape = 's32[2]{0}', space=sflag, size = 0x8, scoped, tag = 'scoped memory for tpu_custom_call.1']
    #allocation6 [shape = 'u8[24576]{0}', space=vmem, size = 0x6000, scoped, tag = 'input window, operand 1']
    #allocation7 [shape = 'u8[8192]{0}', space=vmem, size = 0x2000, scoped, tag = 'input window, operand 2, single buffered']
    #allocation8 [shape = 's32[1]{0}', space=sflag, size = 0x4, scoped, tag = 'scoped memory for tpu_custom_call.1']
    #allocation9 [shape = 'u8[8192]{0}', space=vmem, size = 0x2000, scoped, tag = 'input window, operand 4, single buffered']
    #allocation10 [shape = 'u8[8192]{0}', space=vmem, size = 0x2000, scoped, tag = 'input window, operand 6, single buffered']
    #allocation11 [shape = 's32[1]{0}', space=sflag, size = 0x4, scoped, tag = 'scoped memory for tpu_custom_call.1']
    #allocation12 [shape = 'u8[24576]{0}', space=vmem, size = 0x6000, scoped, tag = 'output window, operand 0']
    #allocation13 [shape = 'u8[16384]{0}', space=vmem, size = 0x4000, scoped, tag = 'output window, operand 1']
    #allocation14 [shape = 's32[2]{0}', space=sflag, size = 0x8, scoped, tag = 'scoped memory for tpu_custom_call.1']
    %15 = vsyncpa [#allocation5], 0
    %16 = vsyncpa [#allocation3], 0
    %s17 = scalar_lea.sflag [#allocation3], 1
    %18 = vsyncpa %s17, 0
    %19 = vsyncpa [#allocation8], 0
    %20 = vsyncpa [#allocation11], 0
    %21 = vsyncpa [#allocation4], 0
    %s22 = scalar_lea.sflag [#allocation4], 1
    %23 = vsyncpa %s22, 0
    %24 = vsyncpa [#allocation14], 0
    %s25 = scalar_lea.sflag [#allocation14], 1
    %26 = vsyncpa %s25, 0
    loop: start=0, step=1, limit=4
    $region2: #{tpu_custom_call.1} parent=1 // loop_pre_header
      _
    $region3: #{tpu_custom_call.1} parent=1 // loop_header
      %s28 = sphi 0, %s32
      %p29 = scmp.ge.s32.totalorder %s28, 4
      %s36 = sphi 0, %s36
      %s38 = sphi 0, %s36
      %s39 = sphi 0, %s38
      %s53 = sphi 0, %s39
      %s59 = sphi 0, %s61
      %s62 = sphi 0, %s59
      %s63 = sphi 0, %s62
      %s79 = sphi 0, %s63
      %s83 = sphi 0, %s83
      %s85 = sphi 0, %s83
      %s86 = sphi 0, %s85
      %s100 = sphi 0, %s86
      %s104 = sphi 0, %s104
      %s106 = sphi 0, %s104
      %s107 = sphi 0, %s106
      %s121 = sphi 0, %s107
      %s125 = sphi 0, %s125
      %s127 = sphi 0, %s125
      %s128 = sphi 0, %s127
      %s142 = sphi 0, %s128
      %s146 = sphi 0, %s146
      %s148 = sphi 0, %s146
      %s149 = sphi 0, %s148
      %s163 = sphi 0, %s149
      %s167 = sphi 0, %s167
      %s169 = sphi 0, %s167
      %s170 = sphi 0, %s169
      %s184 = sphi 0, %s170
      %s188 = sphi 0, %s188
      %s190 = sphi 0, %s188
      %s191 = sphi 0, %s190
      %s205 = sphi 0, %s191
      %s211 = sphi 0, %s213
      %s214 = sphi 0, %s211
      %s215 = sphi 0, %s214
      %s231 = sphi 0, %s215
      %s237 = sphi 0, %s239
      %s240 = sphi 0, %s237
      %s241 = sphi 0, %s240
      %s257 = sphi 0, %s241
    $region4: #{tpu_custom_call.1} parent=1 // loop_header_branch
      %31 = sbr.rel (%p29) target = $region8
    $region5: #{tpu_custom_call.1} parent=1 // loop_body
      %s33 = ssub.s32 %s28, 1
      %s34 = ssub.s32 %s28, 2
      %s35 = sadd.s32 %s28, 1
      %s37 = sadd.s32 %s36, 1
      %p40 = scmp.eq.s32.totalorder %s28, 1
      %p41 = scmp.ne.s32.totalorder %s36, %s38
      %p42 = scmp.eq.s32.totalorder %s28, 0
      %p43 = por %p41, %p42
      %p44 = scmp.ne.s32.totalorder %s36, %s38
      %p45 = scmp.eq.s32.totalorder %s33, 1
      %p46 = por %p44, %p45
      %p47 = scmp.ne.s32.totalorder %s38, %s39
      %p48 = scmp.eq.s32.totalorder %s33, 0
      %p49 = por %p47, %p48
      %p50 = scmp.ne.s32.totalorder %s38, %s39
      %p51 = scmp.eq.s32.totalorder %s34, 1
      %p52 = por %p50, %p51
      %p54 = scmp.ne.s32.totalorder %s39, %s53
      %p55 = scmp.eq.s32.totalorder %s34, 0
      %p56 = por %p54, %p55
      %s57 = ssub.s32 %s28, %s35
      %p58 = scmp.eq.s32.totalorder %s57, 0
      %s60 = sadd.s32 %s59, 1
      %s61 = scalar_select %p58, %s59, %s60
      %p64 = pneg %p58
      %p65 = scmp.eq.s32.totalorder %s28, 1
      %p66 = por %p64, %p65
      %p67 = scmp.ne.s32.totalorder %s59, %s62
      %p68 = scmp.eq.s32.totalorder %s28, 0
      %p69 = por %p67, %p68
      %p70 = scmp.ne.s32.totalorder %s59, %s62
      %p71 = scmp.eq.s32.totalorder %s33, 1
      %p72 = por %p70, %p71
      %p73 = scmp.ne.s32.totalorder %s62, %s63
      %p74 = scmp.eq.s32.totalorder %s33, 0
      %p75 = por %p73, %p74
      %p76 = scmp.ne.s32.totalorder %s62, %s63
      %p77 = scmp.eq.s32.totalorder %s34, 1
      %p78 = por %p76, %p77
      %p80 = scmp.ne.s32.totalorder %s63, %s79
      %p81 = scmp.eq.s32.totalorder %s34, 0
      %p82 = por %p80, %p81
      %s84 = sadd.s32 %s83, 1
      %p87 = scmp.eq.s32.totalorder %s28, 1
      %p88 = scmp.ne.s32.totalorder %s83, %s85
      %p89 = scmp.eq.s32.totalorder %s28, 0
      %p90 = por %p88, %p89
      %p91 = scmp.ne.s32.totalorder %s83, %s85
      %p92 = scmp.eq.s32.totalorder %s33, 1
      %p93 = por %p91, %p92
      %p94 = scmp.ne.s32.totalorder %s85, %s86
      %p95 = scmp.eq.s32.totalorder %s33, 0
      %p96 = por %p94, %p95
      %p97 = scmp.ne.s32.totalorder %s85, %s86
      %p98 = scmp.eq.s32.totalorder %s34, 1
      %p99 = por %p97, %p98
      %p101 = scmp.ne.s32.totalorder %s86, %s100
      %p102 = scmp.eq.s32.totalorder %s34, 0
      %p103 = por %p101, %p102
      %s105 = sadd.s32 %s104, 1
      %p108 = scmp.eq.s32.totalorder %s28, 1
      %p109 = scmp.ne.s32.totalorder %s104, %s106
      %p110 = scmp.eq.s32.totalorder %s28, 0
      %p111 = por %p109, %p110
      %p112 = scmp.ne.s32.totalorder %s104, %s106
      %p113 = scmp.eq.s32.totalorder %s33, 1
      %p114 = por %p112, %p113
      %p115 = scmp.ne.s32.totalorder %s106, %s107
      %p116 = scmp.eq.s32.totalorder %s33, 0
      %p117 = por %p115, %p116
      %p118 = scmp.ne.s32.totalorder %s106, %s107
      %p119 = scmp.eq.s32.totalorder %s34, 1
      %p120 = por %p118, %p119
      %p122 = scmp.ne.s32.totalorder %s107, %s121
      %p123 = scmp.eq.s32.totalorder %s34, 0
      %p124 = por %p122, %p123
      %s126 = sadd.s32 %s125, 1
      %p129 = scmp.eq.s32.totalorder %s28, 1
      %p130 = scmp.ne.s32.totalorder %s125, %s127
      %p131 = scmp.eq.s32.totalorder %s28, 0
      %p132 = por %p130, %p131
      %p133 = scmp.ne.s32.totalorder %s125, %s127
      %p134 = scmp.eq.s32.totalorder %s33, 1
      %p135 = por %p133, %p134
      %p136 = scmp.ne.s32.totalorder %s127, %s128
      %p137 = scmp.eq.s32.totalorder %s33, 0
      %p138 = por %p136, %p137
      %p139 = scmp.ne.s32.totalorder %s127, %s128
      %p140 = scmp.eq.s32.totalorder %s34, 1
      %p141 = por %p139, %p140
      %p143 = scmp.ne.s32.totalorder %s128, %s142
      %p144 = scmp.eq.s32.totalorder %s34, 0
      %p145 = por %p143, %p144
      %s147 = sadd.s32 %s146, 1
      %p150 = scmp.eq.s32.totalorder %s28, 1
      %p151 = scmp.ne.s32.totalorder %s146, %s148
      %p152 = scmp.eq.s32.totalorder %s28, 0
      %p153 = por %p151, %p152
      %p154 = scmp.ne.s32.totalorder %s146, %s148
      %p155 = scmp.eq.s32.totalorder %s33, 1
      %p156 = por %p154, %p155
      %p157 = scmp.ne.s32.totalorder %s148, %s149
      %p158 = scmp.eq.s32.totalorder %s33, 0
      %p159 = por %p157, %p158
      %p160 = scmp.ne.s32.totalorder %s148, %s149
      %p161 = scmp.eq.s32.totalorder %s34, 1
      %p162 = por %p160, %p161
      %p164 = scmp.ne.s32.totalorder %s149, %s163
      %p165 = scmp.eq.s32.totalorder %s34, 0
      %p166 = por %p164, %p165
      %s168 = sadd.s32 %s167, 1
      %p171 = scmp.eq.s32.totalorder %s28, 1
      %p172 = scmp.ne.s32.totalorder %s167, %s169
      %p173 = scmp.eq.s32.totalorder %s28, 0
      %p174 = por %p172, %p173
      %p175 = scmp.ne.s32.totalorder %s167, %s169
      %p176 = scmp.eq.s32.totalorder %s33, 1
      %p177 = por %p175, %p176
      %p178 = scmp.ne.s32.totalorder %s169, %s170
      %p179 = scmp.eq.s32.totalorder %s33, 0
      %p180 = por %p178, %p179
      %p181 = scmp.ne.s32.totalorder %s169, %s170
      %p182 = scmp.eq.s32.totalorder %s34, 1
      %p183 = por %p181, %p182
      %p185 = scmp.ne.s32.totalorder %s170, %s184
      %p186 = scmp.eq.s32.totalorder %s34, 0
      %p187 = por %p185, %p186
      %s189 = sadd.s32 %s188, 1
      %p192 = scmp.eq.s32.totalorder %s28, 1
      %p193 = scmp.ne.s32.totalorder %s188, %s190
      %p194 = scmp.eq.s32.totalorder %s28, 0
      %p195 = por %p193, %p194
      %p196 = scmp.ne.s32.totalorder %s188, %s190
      %p197 = scmp.eq.s32.totalorder %s33, 1
      %p198 = por %p196, %p197
      %p199 = scmp.ne.s32.totalorder %s190, %s191
      %p200 = scmp.eq.s32.totalorder %s33, 0
      %p201 = por %p199, %p200
      %p202 = scmp.ne.s32.totalorder %s190, %s191
      %p203 = scmp.eq.s32.totalorder %s34, 1
      %p204 = por %p202, %p203
      %p206 = scmp.ne.s32.totalorder %s191, %s205
      %p207 = scmp.eq.s32.totalorder %s34, 0
      %p208 = por %p206, %p207
      %s209 = ssub.s32 %s28, %s35
      %p210 = scmp.eq.s32.totalorder %s209, 0
      %s212 = sadd.s32 %s211, 1
      %s213 = scalar_select %p210, %s211, %s212
      %p216 = pneg %p210
      %p217 = scmp.eq.s32.totalorder %s28, 1
      %p218 = por %p216, %p217
      %p219 = scmp.ne.s32.totalorder %s211, %s214
      %p220 = scmp.eq.s32.totalorder %s28, 0
      %p221 = por %p219, %p220
      %p222 = scmp.ne.s32.totalorder %s211, %s214
      %p223 = scmp.eq.s32.totalorder %s33, 1
      %p224 = por %p222, %p223
      %p225 = scmp.ne.s32.totalorder %s214, %s215
      %p226 = scmp.eq.s32.totalorder %s33, 0
      %p227 = por %p225, %p226
      %p228 = scmp.ne.s32.totalorder %s214, %s215
      %p229 = scmp.eq.s32.totalorder %s34, 1
      %p230 = por %p228, %p229
      %p232 = scmp.ne.s32.totalorder %s215, %s231
      %p233 = scmp.eq.s32.totalorder %s34, 0
      %p234 = por %p232, %p233
      %s235 = ssub.s32 %s28, %s35
      %p236 = scmp.eq.s32.totalorder %s235, 0
      %s238 = sadd.s32 %s237, 1
      %s239 = scalar_select %p236, %s237, %s238
      %p242 = pneg %p236
      %p243 = scmp.eq.s32.totalorder %s28, 1
      %p244 = por %p242, %p243
      %p245 = scmp.ne.s32.totalorder %s237, %s240
      %p246 = scmp.eq.s32.totalorder %s28, 0
      %p247 = por %p245, %p246
      %p248 = scmp.ne.s32.totalorder %s237, %s240
      %p249 = scmp.eq.s32.totalorder %s33, 1
      %p250 = por %p248, %p249
      %p251 = scmp.ne.s32.totalorder %s240, %s241
      %p252 = scmp.eq.s32.totalorder %s33, 0
      %p253 = por %p251, %p252
      %p254 = scmp.ne.s32.totalorder %s240, %s241
      %p255 = scmp.eq.s32.totalorder %s34, 1
      %p256 = por %p254, %p255
      %p258 = scmp.ne.s32.totalorder %s241, %s257
      %p259 = scmp.eq.s32.totalorder %s34, 0
      %p260 = por %p258, %p259
      %p261 = scmp.le.s32.totalorder 1, %s28
      %p262 = scmp.lt.s32.totalorder %s28, 3
      %p263 = pnand %p261, %p262
      %p264 = pneg %p263
      // Predicated region
      $region9: #{tpu_custom_call.1} parent=5 // pred_check
        _
      $region10: #{tpu_custom_call.1} parent=5 // pred_check_branch
        %266 = sbr.rel (%p263) target = $region12
      $region11: #{tpu_custom_call.1} parent=5 // pred_region
        %s267 = ssub.s32 %s28, 1
        // Predicated region
        $region13: #{tpu_custom_call.1} parent=11 // pred_check
          %p268 = pneg %p49
        $region14: #{tpu_custom_call.1} parent=11 // pred_check_branch
          %270 = sbr.rel (%p268) target = $region16
        $region15: #{tpu_custom_call.1} parent=11 // pred_region
          %272 = vsyncadd [#allocation5], 0
          %s274 = sshll.u32 %s0, 4
          %s275 = int_to_ptr.hbm [resolvable:$true] %s274
          %277 = dma.hbm_to_smem %s275, 16, [#allocation2], [#allocation5]
        $region16: #{tpu_custom_call.1} parent=11 // pred_fallthru
          _
        // Predicated region
        $region17: #{tpu_custom_call.1} parent=11 // pred_check
          %p278 = pneg %p96
        $region18: #{tpu_custom_call.1} parent=11 // pred_check_branch
          %280 = sbr.rel (%p278) target = $region20
        $region19: #{tpu_custom_call.1} parent=11 // pred_region
          %282 = vsyncadd [#allocation8], 0
          %s283 = sshll.u32 %s2, 4
          %s284 = int_to_ptr.hbm [resolvable:$true] %s283
          %s285 = sshll.u32 [#allocation7], 4
          %s286 = int_to_ptr.vmem [resolvable:$true] %s285
          %291 = dma.hbm_to_vmem [thread:$0]  %s284, 256, %s286, [#allocation8], 64, 64, 4
        $region20: #{tpu_custom_call.1} parent=11 // pred_fallthru
          _
        // Predicated region
        $region21: #{tpu_custom_call.1} parent=11 // pred_check
          %p292 = pneg %p117
        $region22: #{tpu_custom_call.1} parent=11 // pred_check_branch
          %294 = sbr.rel (%p292) target = $region24
        $region23: #{tpu_custom_call.1} parent=11 // pred_region
          _
        $region24: #{tpu_custom_call.1} parent=11 // pred_fallthru
          _
        // Predicated region
        $region25: #{tpu_custom_call.1} parent=11 // pred_check
          %p295 = pneg %p138
        $region26: #{tpu_custom_call.1} parent=11 // pred_check_branch
          %297 = sbr.rel (%p295) target = $region28
        $region27: #{tpu_custom_call.1} parent=11 // pred_region
          %299 = vsyncadd [#allocation8], 0
          %s300 = sshll.u32 %s4, 4
          %s301 = int_to_ptr.hbm [resolvable:$true] %s300
          %s302 = sshll.u32 [#allocation9], 4
          %s303 = int_to_ptr.vmem [resolvable:$true] %s302
          %308 = dma.hbm_to_vmem [thread:$0]  %s301, 256, %s303, [#allocation8], 64, 64, 4
        $region28: #{tpu_custom_call.1} parent=11 // pred_fallthru
          _
        // Predicated region
        $region29: #{tpu_custom_call.1} parent=11 // pred_check
          %p309 = pneg %p159
        $region30: #{tpu_custom_call.1} parent=11 // pred_check_branch
          %311 = sbr.rel (%p309) target = $region32
        $region31: #{tpu_custom_call.1} parent=11 // pred_region
          _
        $region32: #{tpu_custom_call.1} parent=11 // pred_fallthru
          _
        // Predicated region
        $region33: #{tpu_custom_call.1} parent=11 // pred_check
          %p312 = pneg %p180
        $region34: #{tpu_custom_call.1} parent=11 // pred_check_branch
          %314 = sbr.rel (%p312) target = $region36
        $region35: #{tpu_custom_call.1} parent=11 // pred_region
          %316 = vsyncadd [#allocation11], 0
          %s317 = sshll.u32 %s6, 4
          %s318 = int_to_ptr.hbm [resolvable:$true] %s317
          %s319 = sshll.u32 [#allocation10], 4
          %s320 = int_to_ptr.vmem [resolvable:$true] %s319
          %325 = dma.hbm_to_vmem [thread:$0]  %s318, 256, %s320, [#allocation11], 64, 64, 4
        $region36: #{tpu_custom_call.1} parent=11 // pred_fallthru
          _
        // Predicated region
        $region37: #{tpu_custom_call.1} parent=11 // pred_check
          %p326 = pneg %p201
        $region38: #{tpu_custom_call.1} parent=11 // pred_check_branch
          %328 = sbr.rel (%p326) target = $region40
        $region39: #{tpu_custom_call.1} parent=11 // pred_region
          _
        $region40: #{tpu_custom_call.1} parent=11 // pred_fallthru
          _
      $region12: #{tpu_custom_call.1} parent=5 // pred_fallthru
        _
      %p329 = scmp.lt.s32.totalorder %s28, 2
      // Predicated region
      $region41: #{tpu_custom_call.1} parent=5 // pred_check
        %p330 = pneg %p329
      $region42: #{tpu_custom_call.1} parent=5 // pred_check_branch
        %332 = sbr.rel (%p330) target = $region44
      $region43: #{tpu_custom_call.1} parent=5 // pred_region
        // Predicated region
        $region45: #{tpu_custom_call.1} parent=43 // pred_check
          %p333 = pneg %p69
        $region46: #{tpu_custom_call.1} parent=43 // pred_check_branch
          %335 = sbr.rel (%p333) target = $region48
        $region47: #{tpu_custom_call.1} parent=43 // pred_region
          #allocation16 [shape = 'u32[6]{0}', space=smem, size = 0x18, scoped, tag = 'DMA stride descriptor']
          %s336 = sand.u32 %s59, 1
          %s337 = scalar_lea.sflag [#allocation3], %s336
          %s338 = sand.u32 %s59, 1
          %s339 = smul.addr %s338, 24
          %s340 = scalar_lea.vmem [#allocation6], %s339
          %s341 = smul.u32 2, %s28
          %343 = vsyncadd %s337, 0
          %s344 = smul.addr %s341, 4
          %s345 = scalar_lea.hbm %s1, %s344
          %s347 = sshll.u32 1, 14
          %s348 = sxor.u32 4294967295, %s347
          %s350 = sld [smem:[#allocation0]]
          %s351 = sadd.s32 2, %s350
          %s353 = sshll.u32 7, 26
          %s354 = sxor.u32 4294967295, %s353
          %s355 = sand.u32 0, %s354
          %s356 = sshll.u32 %s351, 26
          %s357 = sor.u32 %s355, %s356
          %s358 = sshll.u32 %s345, 4
          %s359 = int_to_ptr.hbm [resolvable:$true] %s358
          %s360 = sshll.u32 %s340, 4
          %s361 = int_to_ptr.vmem [resolvable:$true] %s360
          %367 = sst [smem:[#allocation16]] 256
          %s368 = scalar_lea.smem [#allocation16], 1
          %369 = sst [smem:[%s368]] 128
          %s370 = scalar_lea.smem [#allocation16], 2
          %371 = sst [smem:[%s370]] 2
          %s372 = scalar_lea.smem [#allocation16], 3
          %373 = sst [smem:[%s372]] 64
          %s374 = scalar_lea.smem [#allocation16], 4
          %375 = sst [smem:[%s374]] 64
          %s376 = scalar_lea.smem [#allocation16], 5
          %377 = sst [smem:[%s376]] 4
          %379 = dma.general %s359, 384, %s361, %s337, [#allocation15], [#allocation16], %s357, 0
        $region48: #{tpu_custom_call.1} parent=43 // pred_fallthru
          _
      $region44: #{tpu_custom_call.1} parent=5 // pred_fallthru
        _
      %p380 = scmp.le.s32.totalorder 1, %s28
      %p381 = scmp.lt.s32.totalorder %s28, 3
      %p382 = pnand %p380, %p381
      %p383 = pneg %p382
      // Predicated region
      $region49: #{tpu_custom_call.1} parent=5 // pred_check
        _
      $region50: #{tpu_custom_call.1} parent=5 // pred_check_branch
        %385 = sbr.rel (%p382) target = $region52
      $region51: #{tpu_custom_call.1} parent=5 // pred_region
        %s386 = ssub.s32 %s28, 1
        // Predicated region
        $region53: #{tpu_custom_call.1} parent=51 // pred_check
          %p387 = pneg %p49
        $region54: #{tpu_custom_call.1} parent=51 // pred_check_branch
          %389 = sbr.rel (%p387) target = $region56
        $region55: #{tpu_custom_call.1} parent=51 // pred_region
          %391 = dma.done [#allocation5], 16
        $region56: #{tpu_custom_call.1} parent=51 // pred_fallthru
          _
        %s392 = sand.u32 %s62, 1
        %s393 = scalar_lea.sflag [#allocation3], %s392
        %s394 = sand.u32 %s62, 1
        %s395 = smul.addr %s394, 24
        %s396 = scalar_lea.vmem [#allocation6], %s395
        // Predicated region
        $region57: #{tpu_custom_call.1} parent=51 // pred_check
          %p397 = pneg %p75
        $region58: #{tpu_custom_call.1} parent=51 // pred_check_branch
          %399 = sbr.rel (%p397) target = $region60
        $region59: #{tpu_custom_call.1} parent=51 // pred_region
          %401 = dma.done %s393, 384
        $region60: #{tpu_custom_call.1} parent=51 // pred_fallthru
          _
        // Predicated region
        $region61: #{tpu_custom_call.1} parent=51 // pred_check
          %p402 = pneg %p96
        $region62: #{tpu_custom_call.1} parent=51 // pred_check_branch
          %404 = sbr.rel (%p402) target = $region64
        $region63: #{tpu_custom_call.1} parent=51 // pred_region
          %406 = dma.done [#allocation8], 256
        $region64: #{tpu_custom_call.1} parent=51 // pred_fallthru
          _
        // Predicated region
        $region65: #{tpu_custom_call.1} parent=51 // pred_check
          %p407 = pneg %p138
        $region66: #{tpu_custom_call.1} parent=51 // pred_check_branch
          %409 = sbr.rel (%p407) target = $region68
        $region67: #{tpu_custom_call.1} parent=51 // pred_region
          %411 = dma.done [#allocation8], 256
        $region68: #{tpu_custom_call.1} parent=51 // pred_fallthru
          _
        // Predicated region
        $region69: #{tpu_custom_call.1} parent=51 // pred_check
          %p412 = pneg %p180
        $region70: #{tpu_custom_call.1} parent=51 // pred_check_branch
          %414 = sbr.rel (%p412) target = $region72
        $region71: #{tpu_custom_call.1} parent=51 // pred_region
          %416 = dma.done [#allocation11], 256
        $region72: #{tpu_custom_call.1} parent=51 // pred_fallthru
          _
        %417 = sfence
        %p418 = pneg %p49
        %p419 = pneg %p46
        %s420 = sand.u32 %s62, 1
        %s421 = scalar_lea.sflag [#allocation3], %s420
        %s422 = sand.u32 %s62, 1
        %s423 = smul.addr %s422, 24
        %s424 = scalar_lea.vmem [#allocation6], %s423
        %p425 = pneg %p75
        %p426 = pneg %p72
        %p427 = pneg %p96
        %p428 = pneg %p93
        %p429 = pneg %p117
        %p430 = pneg %p114
        %p431 = pneg %p138
        %p432 = pneg %p135
        %p433 = pneg %p159
        %p434 = pneg %p156
        %p435 = pneg %p180
        %p436 = pneg %p177
        %p437 = pneg %p201
        %p438 = pneg %p198
        %p439 = pneg %p227
        %p440 = pneg %p224
        %s441 = sand.u32 %s214, 1
        %s442 = scalar_lea.sflag [#allocation4], %s441
        %s443 = sand.u32 %s214, 1
        %s444 = smul.addr %s443, 24
        %s445 = scalar_lea.vmem [#allocation12], %s444
        %p446 = pneg %p253
        %p447 = pneg %p250
        %s448 = sand.u32 %s240, 1
        %s449 = scalar_lea.sflag [#allocation14], %s448
        %s450 = sand.u32 %s240, 1
        %s451 = smul.addr %s450, 16
        %s452 = scalar_lea.vmem [#allocation13], %s451
        %s453 = smul.u32 2, %s33
        %s454 = smul.u32 2, %s33
        %s455 = smul.u32 2, %s33
        %v457 = vld [vmem:[#allocation7] sm:$0xf]
        %v458 = vld [vmem:[#allocation7 + $0x4] sm:$0xf]
        %v459 = vld [vmem:[#allocation7 + $0x8] sm:$0xf]
        %v460 = vld [vmem:[#allocation7 + $0xc] sm:$0xf]
        %v461 = vld [vmem:[%s3] sm:$0x1]
        %v462 = vld [vmem:[#allocation9] sm:$0xf]
        %v463 = vld [vmem:[#allocation9 + $0x4] sm:$0xf]
        %v464 = vld [vmem:[#allocation9 + $0x8] sm:$0xf]
        %v465 = vld [vmem:[#allocation9 + $0xc] sm:$0xf]
        %v466 = vld [vmem:[%s5] sm:$0x1]
        %v467 = vld [vmem:[#allocation10] sm:$0xf]
        %v468 = vld [vmem:[#allocation10 + $0x4] sm:$0xf]
        %v469 = vld [vmem:[#allocation10 + $0x8] sm:$0xf]
        %v470 = vld [vmem:[#allocation10 + $0xc] sm:$0xf]
        %v471 = vld [vmem:[%s7] sm:$0x1]
        %v472 = vld [vmem:[%s396] sm:$0xf]
        %v473 = vld [vmem:[%s396 + $0x4] sm:$0xf]
        %v475 = vperm.slane %v461, 0
        %v479 = vunpack.c.l.b16 %v472
        %v480 = vunpack.c.l.b16 %v473
        %v481 = vpack.c.b16 %v480, %v479
        %v486 = vunpack.c.l.b16 %v457
        %v487 = vunpack.c.l.b16 %v458
        %v488 = vunpack.c.l.b16 %v459
        %v489 = vunpack.c.l.b16 %v460
        %v490 = vpack.c.b16 %v487, %v486
        %v491 = vpack.c.b16 %v489, %v488
        %vm494 = vcmask 261120
        %v496 = vsel %vm494, %v481, 0
        %498 = vmatpush.bf16.msra.mxu0 0
        %499 = vmatpush.bf16.msra.mxu0 0
        %500 = vmatpush.bf16.msra.mxu0 0
        %501 = vmatpush.bf16.msra.mxu0 0
        %502 = vmatpush.bf16.msra.mxu0 0
        %503 = vmatpush.bf16.msra.mxu0 0
        %504 = vmatpush.bf16.msra.mxu0 %v491
        %505 = vmatpush.bf16.msra.mxu0 %v490
        %506 = vmatmul.bf16.gmra.mxu0 %v496
        %v507 = vpop.f32.mrf.mxu0
        %v508 = vadd.f32 %v475, %v507
        %v509 = vpop.f32.mrf.mxu0
        %v510 = vadd.f32 %v475, %v509
        %511 = vdwg.mxu0
        %v512 = vmax.f32 %v508, 0.0
        %v513 = vmax.f32 %v510, 0.0
        %v514 = vpack.c.bf16 %v513, %v512
        %v516 = vperm.slane %v466, 0
        %v522 = vunpack.c.l.b16 %v462
        %v523 = vunpack.c.l.b16 %v463
        %v524 = vunpack.c.l.b16 %v464
        %v525 = vunpack.c.l.b16 %v465
        %v526 = vpack.c.b16 %v523, %v522
        %v527 = vpack.c.b16 %v525, %v524
        %v531 = vsel %vm494, %v514, 0
        %533 = vmatpush.bf16.msra.mxu0 0
        %534 = vmatpush.bf16.msra.mxu0 0
        %535 = vmatpush.bf16.msra.mxu0 0
        %536 = vmatpush.bf16.msra.mxu0 0
        %537 = vmatpush.bf16.msra.mxu0 0
        %538 = vmatpush.bf16.msra.mxu0 0
        %539 = vmatpush.bf16.msra.mxu0 %v527
        %540 = vmatpush.bf16.msra.mxu0 %v526
        %541 = vmatmul.bf16.gmra.mxu0 %v531
        %v542 = vpop.f32.mrf.mxu0
        %v543 = vadd.f32 %v516, %v542
        %v544 = vpop.f32.mrf.mxu0
        %v545 = vadd.f32 %v516, %v544
        %546 = vdwg.mxu0
        %v547 = vmax.f32 %v543, 0.0
        %v548 = vmax.f32 %v545, 0.0
        %v549 = vpack.c.bf16 %v548, %v547
        %v551 = vperm.slane %v471, 0
        %v557 = vunpack.c.l.b16 %v467
        %v558 = vunpack.c.l.b16 %v468
        %v559 = vunpack.c.l.b16 %v469
        %v560 = vunpack.c.l.b16 %v470
        %v561 = vpack.c.b16 %v558, %v557
        %v562 = vpack.c.b16 %v560, %v559
        %v566 = vsel %vm494, %v549, 0
        %568 = vmatpush.bf16.msra.mxu0 0
        %569 = vmatpush.bf16.msra.mxu0 0
        %570 = vmatpush.bf16.msra.mxu0 0
        %571 = vmatpush.bf16.msra.mxu0 0
        %572 = vmatpush.bf16.msra.mxu0 0
        %573 = vmatpush.bf16.msra.mxu0 0
        %574 = vmatpush.bf16.msra.mxu0 %v562
        %575 = vmatpush.bf16.msra.mxu0 %v561
        %576 = vmatmul.bf16.gmra.mxu0 %v566
        %v577 = vpop.f32.mrf.mxu0
        %v578 = vadd.f32 %v551, %v577
        %v579 = vpop.f32.mrf.mxu0
        %v580 = vadd.f32 %v551, %v579
        %581 = vdwg.mxu0
        %v582 = vpack.c.bf16 %v578, %v578
        %v583 = vpack.c.bf16 %v580, %v580
        %584 = vst [vmem:[%s445] sm:$0xf] %v582
        %585 = vst [vmem:[%s445 + $0x4] sm:$0xf] %v583
        %s586 = sld [smem:[#allocation2]]
        %v587 = vstv %s586
        %v588 = vmul.f32 %v587, %v578
        %v589 = vmul.f32 %v587, %v580
        %s590 = scalar_lea.vmem %s396, 8 [#allocation6]
        %v591 = vld [vmem:[%s590] sm:$0xf]
        %v592 = vld [vmem:[%s590 + $0x4] sm:$0xf]
        %v595 = vunpack.c.l.b16 %v591
        %v596 = vunpack.c.l.b16 %v592
        %v597 = vpack.c.b16 %v596, %v595
        %v599 = vsel %vm494, %v597, 0
        %601 = vmatpush.bf16.msra.mxu0 0
        %602 = vmatpush.bf16.msra.mxu0 0
        %603 = vmatpush.bf16.msra.mxu0 0
        %604 = vmatpush.bf16.msra.mxu0 0
        %605 = vmatpush.bf16.msra.mxu0 0
        %606 = vmatpush.bf16.msra.mxu0 0
        %607 = vmatpush.bf16.msra.mxu0 %v491
        %608 = vmatpush.bf16.msra.mxu0 %v490
        %609 = vmatmul.bf16.gmra.mxu0 %v599
        %v610 = vpop.f32.mrf.mxu0
        %v611 = vadd.f32 %v475, %v610
        %v612 = vpop.f32.mrf.mxu0
        %v613 = vadd.f32 %v475, %v612
        %614 = vdwg.mxu0
        %v615 = vmax.f32 %v611, 0.0
        %v616 = vmax.f32 %v613, 0.0
        %v617 = vpack.c.bf16 %v616, %v615
        %v619 = vsel %vm494, %v617, 0
        %621 = vmatpush.bf16.msra.mxu0 0
        %622 = vmatpush.bf16.msra.mxu0 0
        %623 = vmatpush.bf16.msra.mxu0 0
        %624 = vmatpush.bf16.msra.mxu0 0
        %625 = vmatpush.bf16.msra.mxu0 0
        %626 = vmatpush.bf16.msra.mxu0 0
        %627 = vmatpush.bf16.msra.mxu0 %v527
        %628 = vmatpush.bf16.msra.mxu0 %v526
        %629 = vmatmul.bf16.gmra.mxu0 %v619
        %v630 = vpop.f32.mrf.mxu0
        %v631 = vadd.f32 %v516, %v630
        %v632 = vpop.f32.mrf.mxu0
        %v633 = vadd.f32 %v516, %v632
        %634 = vdwg.mxu0
        %v635 = vmax.f32 %v631, 0.0
        %v636 = vmax.f32 %v633, 0.0
        %v637 = vpack.c.bf16 %v636, %v635
        %v639 = vsel %vm494, %v637, 0
        %641 = vmatpush.bf16.msra.mxu0 0
        %642 = vmatpush.bf16.msra.mxu0 0
        %643 = vmatpush.bf16.msra.mxu0 0
        %644 = vmatpush.bf16.msra.mxu0 0
        %645 = vmatpush.bf16.msra.mxu0 0
        %646 = vmatpush.bf16.msra.mxu0 0
        %647 = vmatpush.bf16.msra.mxu0 %v562
        %648 = vmatpush.bf16.msra.mxu0 %v561
        %649 = vmatmul.bf16.gmra.mxu0 %v639
        %v650 = vpop.f32.mrf.mxu0
        %v651 = vadd.f32 %v551, %v650
        %v652 = vpop.f32.mrf.mxu0
        %v653 = vadd.f32 %v551, %v652
        %654 = vdwg.mxu0
        %v655 = vpack.c.bf16 %v651, %v651
        %v656 = vpack.c.bf16 %v653, %v653
        %s657 = scalar_lea.vmem %s445, 8 [#allocation12]
        %658 = vst [vmem:[%s657] sm:$0xf] %v655
        %659 = vst [vmem:[%s657 + $0x4] sm:$0xf] %v656
        %s660 = sld [smem:[#allocation2 + $0x1]]
        %v661 = vstv %s660
        %v662 = vmul.f32 %v661, %v651
        %v663 = vmul.f32 %v661, %v653
        %v664 = vadd.f32 %v588, %v662
        %v665 = vadd.f32 %v589, %v663
        %s666 = scalar_lea.vmem %s396, 16 [#allocation6]
        %v667 = vld [vmem:[%s666] sm:$0xf]
        %v668 = vld [vmem:[%s666 + $0x4] sm:$0xf]
        %v671 = vunpack.c.l.b16 %v667
        %v672 = vunpack.c.l.b16 %v668
        %v673 = vpack.c.b16 %v672, %v671
        %v675 = vsel %vm494, %v673, 0
        %677 = vmatpush.bf16.msra.mxu0 0
        %678 = vmatpush.bf16.msra.mxu0 0
        %679 = vmatpush.bf16.msra.mxu0 0
        %680 = vmatpush.bf16.msra.mxu0 0
        %681 = vmatpush.bf16.msra.mxu0 0
        %682 = vmatpush.bf16.msra.mxu0 0
        %683 = vmatpush.bf16.msra.mxu0 %v491
        %684 = vmatpush.bf16.msra.mxu0 %v490
        %685 = vmatmul.bf16.gmra.mxu0 %v675
        %v686 = vpop.f32.mrf.mxu0
        %v687 = vadd.f32 %v475, %v686
        %v688 = vpop.f32.mrf.mxu0
        %v689 = vadd.f32 %v475, %v688
        %690 = vdwg.mxu0
        %v691 = vmax.f32 %v687, 0.0
        %v692 = vmax.f32 %v689, 0.0
        %v693 = vpack.c.bf16 %v692, %v691
        %v695 = vsel %vm494, %v693, 0
        %697 = vmatpush.bf16.msra.mxu0 0
        %698 = vmatpush.bf16.msra.mxu0 0
        %699 = vmatpush.bf16.msra.mxu0 0
        %700 = vmatpush.bf16.msra.mxu0 0
        %701 = vmatpush.bf16.msra.mxu0 0
        %702 = vmatpush.bf16.msra.mxu0 0
        %703 = vmatpush.bf16.msra.mxu0 %v527
        %704 = vmatpush.bf16.msra.mxu0 %v526
        %705 = vmatmul.bf16.gmra.mxu0 %v695
        %v706 = vpop.f32.mrf.mxu0
        %v707 = vadd.f32 %v516, %v706
        %v708 = vpop.f32.mrf.mxu0
        %v709 = vadd.f32 %v516, %v708
        %710 = vdwg.mxu0
        %v711 = vmax.f32 %v707, 0.0
        %v712 = vmax.f32 %v709, 0.0
        %v713 = vpack.c.bf16 %v712, %v711
        %v715 = vsel %vm494, %v713, 0
        %717 = vmatpush.bf16.msra.mxu0 0
        %718 = vmatpush.bf16.msra.mxu0 0
        %719 = vmatpush.bf16.msra.mxu0 0
        %720 = vmatpush.bf16.msra.mxu0 0
        %721 = vmatpush.bf16.msra.mxu0 0
        %722 = vmatpush.bf16.msra.mxu0 0
        %723 = vmatpush.bf16.msra.mxu0 %v562
        %724 = vmatpush.bf16.msra.mxu0 %v561
        %725 = vmatmul.bf16.gmra.mxu0 %v715
        %v726 = vpop.f32.mrf.mxu0
        %v727 = vadd.f32 %v551, %v726
        %v728 = vpop.f32.mrf.mxu0
        %v729 = vadd.f32 %v551, %v728
        %730 = vdwg.mxu0
        %v731 = vpack.c.bf16 %v727, %v727
        %v732 = vpack.c.bf16 %v729, %v729
        %s733 = scalar_lea.vmem %s445, 16 [#allocation12]
        %734 = vst [vmem:[%s733] sm:$0xf] %v731
        %735 = vst [vmem:[%s733 + $0x4] sm:$0xf] %v732
        %s736 = sld [smem:[#allocation2 + $0x2]]
        %v737 = vstv %s736
        %v738 = vmul.f32 %v737, %v727
        %v739 = vmul.f32 %v737, %v729
        %v740 = vadd.f32 %v664, %v738
        %v741 = vadd.f32 %v665, %v739
        %742 = vst [vmem:[%s452] sm:$0xff] %v740
        %743 = vst [vmem:[%s452 + $0x8] sm:$0xff] %v741
        %s744 = sand.u32 %s214, 1
        %s745 = scalar_lea.sflag [#allocation4], %s744
        %s746 = sand.u32 %s214, 1
        %s747 = smul.addr %s746, 24
        %s748 = scalar_lea.vmem [#allocation12], %s747
        %s749 = sand.u32 %s240, 1
        %s750 = scalar_lea.sflag [#allocation14], %s749
        %s751 = sand.u32 %s240, 1
        %s752 = smul.addr %s751, 16
        %s753 = scalar_lea.vmem [#allocation13], %s752
        // Predicated region
        $region73: #{tpu_custom_call.1} parent=51 // pred_check
          %p754 = pneg %p224
        $region74: #{tpu_custom_call.1} parent=51 // pred_check_branch
          %756 = sbr.rel (%p754) target = $region76
        $region75: #{tpu_custom_call.1} parent=51 // pred_region
          #allocation18 [shape = 'u32[6]{0}', space=smem, size = 0x18, scoped, tag = 'DMA stride descriptor']
          %s757 = smul.u32 2, %s33
          %759 = vsyncadd %s745, 0
          %s760 = smul.addr %s757, 4
          %s761 = scalar_lea.hbm %s8, %s760
          %s763 = sshll.u32 1, 14
          %s764 = sxor.u32 4294967295, %s763
          %s767 = sshll.u32 7, 18
          %s768 = sxor.u32 4294967295, %s767
          %s769 = sand.u32 0, %s768
          %s771 = sor.u32 %s769, 0
          %s772 = sshll.u32 %s748, 4
          %s773 = int_to_ptr.vmem [resolvable:$true] %s772
          %s774 = sshll.u32 %s761, 4
          %s775 = int_to_ptr.hbm [resolvable:$true] %s774
          %781 = sst [smem:[#allocation18]] 128
          %s782 = scalar_lea.smem [#allocation18], 1
          %783 = sst [smem:[%s782]] 256
          %s784 = scalar_lea.smem [#allocation18], 2
          %785 = sst [smem:[%s784]] 2
          %s786 = scalar_lea.smem [#allocation18], 3
          %787 = sst [smem:[%s786]] 64
          %s788 = scalar_lea.smem [#allocation18], 4
          %789 = sst [smem:[%s788]] 64
          %s790 = scalar_lea.smem [#allocation18], 5
          %791 = sst [smem:[%s790]] 4
          %793 = dma.general %s773, 384, %s775, %s745, [#allocation17], [#allocation18], %s771, 0
        $region76: #{tpu_custom_call.1} parent=51 // pred_fallthru
          _
        // Predicated region
        $region77: #{tpu_custom_call.1} parent=51 // pred_check
          %p794 = pneg %p250
        $region78: #{tpu_custom_call.1} parent=51 // pred_check_branch
          %796 = sbr.rel (%p794) target = $region80
        $region79: #{tpu_custom_call.1} parent=51 // pred_region
          %s797 = smul.u32 2, %s33
          %799 = vsyncadd %s750, 0
          %s800 = smul.addr %s797, 8
          %s801 = scalar_lea.hbm %s9, %s800
          %s802 = sshll.u32 %s753, 4
          %s803 = int_to_ptr.vmem [resolvable:$true] %s802
          %s804 = sshll.u32 %s801, 4
          %s805 = int_to_ptr.hbm [resolvable:$true] %s804
          %810 = dma.vmem_to_hbm [thread:$0]  %s803, 256, %s805, %s750, 128, 128, 8
        $region80: #{tpu_custom_call.1} parent=51 // pred_fallthru
          _
      $region52: #{tpu_custom_call.1} parent=5 // pred_fallthru
        _
      %p811 = scmp.le.s32.totalorder 2, %s28
      // Predicated region
      $region81: #{tpu_custom_call.1} parent=5 // pred_check
        %p812 = pneg %p811
      $region82: #{tpu_custom_call.1} parent=5 // pred_check_branch
        %814 = sbr.rel (%p812) target = $region84
      $region83: #{tpu_custom_call.1} parent=5 // pred_region
        %s815 = ssub.s32 %s28, 2
        // Predicated region
        $region85: #{tpu_custom_call.1} parent=83 // pred_check
          %p816 = pneg %p230
        $region86: #{tpu_custom_call.1} parent=83 // pred_check_branch
          %818 = sbr.rel (%p816) target = $region88
        $region87: #{tpu_custom_call.1} parent=83 // pred_region
          %s819 = sand.u32 %s215, 1
          %s820 = scalar_lea.sflag [#allocation4], %s819
          %s821 = sand.u32 %s215, 1
          %s822 = smul.addr %s821, 24
          %s823 = scalar_lea.vmem [#allocation12], %s822
          %825 = dma.done %s820, 384
        $region88: #{tpu_custom_call.1} parent=83 // pred_fallthru
          _
        // Predicated region
        $region89: #{tpu_custom_call.1} parent=83 // pred_check
          %p826 = pneg %p256
        $region90: #{tpu_custom_call.1} parent=83 // pred_check_branch
          %828 = sbr.rel (%p826) target = $region92
        $region91: #{tpu_custom_call.1} parent=83 // pred_region
          %s829 = sand.u32 %s241, 1
          %s830 = scalar_lea.sflag [#allocation14], %s829
          %s831 = sand.u32 %s241, 1
          %s832 = smul.addr %s831, 16
          %s833 = scalar_lea.vmem [#allocation13], %s832
          %835 = dma.done %s830, 256
        $region92: #{tpu_custom_call.1} parent=83 // pred_fallthru
          _
      $region84: #{tpu_custom_call.1} parent=5 // pred_fallthru
        _
    $region6: #{tpu_custom_call.1} parent=1 // loop_footer
      %s32 = sadd.s32 1, %s28
    $region7: #{tpu_custom_call.1} parent=1 // loop_footer_branch
      %27 = sbr.rel target = $region3
    $region8: #{tpu_custom_call.1} parent=1 // loop_exit
      _
    %836 = vsyncpa [#allocation3], 1
    %s837 = scalar_lea.sflag [#allocation3], 1
    %838 = vsyncpa %s837, 1
    %839 = vsyncpa [#allocation8], 1
    %840 = vsyncpa [#allocation11], 1
    %841 = vsyncpa [#allocation4], 1
    %s842 = scalar_lea.sflag [#allocation4], 1
    %843 = vsyncpa %s842, 1
    %844 = vsyncpa [#allocation14], 1
    %s845 = scalar_lea.sflag [#allocation14], 1
    %846 = vsyncpa %s845, 1
    %847 = vsyncpa [#allocation5], 1
    %s848 = scalar_lea.sflag [#allocation5], 1
    %849 = vsyncpa %s848, 1

</llo_original>
